<compile_context>
chip_gen: v6e
topology: v6e:2x2x1
jax: 0.10.0
libtpu: 0.0.40
codegen_flags: <defaults>
</compile_context>

<pallas_src>
import numpy as np
import jax
import jax.numpy as jnp
from jax.experimental import pallas as pl
from jax.experimental.pallas import tpu as pltpu


# ---------------------------------------------------------------------------
# Fused forward kernel: everything VMEM/SMEM resident, single invocation.
# ---------------------------------------------------------------------------
def _ntrack_kernel(x_ref, bw_ref, pk_ref, sc_ref, o_ref):
    # Packed buffer layout (rows): [0:In] w0' | [In] b0' | [In+1] W1 row 0 | [In+2] W1 row 1
    In = pk_ref.shape[0] - 3

    w0 = pk_ref[0:In, :]              # (In, 32)  input normalization pre-folded
    b0 = pk_ref[In:In + 1, :]         # (1, 32)
    w1r0 = pk_ref[In + 1:In + 2, :]   # (1, 32)   dense1.weight row 0
    w1r1 = pk_ref[In + 2:In + 3, :]   # (1, 32)   dense1.weight row 1

    # Only MXU op in the kernel: (B, In) @ (In, 32), bias + relu fused on VPU.
    h = jnp.maximum(
        jnp.dot(x_ref[...], w0, preferred_element_type=jnp.float32) + b0,
        0.0)                                                           # (B, 32)

    # dense1 (32 -> 2) as VPU multiply + XLU lane reduce.  The two hidden
    # features stay as separate (B, 1) columns -> no concatenate anywhere.
    hidden0 = jnp.maximum(
        jnp.sum(h * w1r0, axis=-1, keepdims=True) + sc_ref[0], 0.0)    # (B, 1)
    hidden1 = jnp.maximum(
        jnp.sum(h * w1r1, axis=-1, keepdims=True) + sc_ref[1], 0.0)    # (B, 1)

    # Weighted batch statistics via sublane reductions (no MXU round trips).
    bw = bw_ref[...]                                                   # (B, 1)
    mean0 = jnp.sum(bw * hidden0, axis=0, keepdims=True)               # (1, 1)
    mean1 = jnp.sum(bw * hidden1, axis=0, keepdims=True)               # (1, 1)
    sec0 = jnp.sum(bw * hidden0 * hidden0, axis=0, keepdims=True)      # (1, 1)
    sec1 = jnp.sum(bw * hidden1 * hidden1, axis=0, keepdims=True)      # (1, 1)
    # NOTE: like the PyTorch model, "std" is the biased E[x^2] - E[x]^2 (no sqrt).
    std0 = sec0 - mean0 * mean0
    std1 = sec1 - mean1 * mean1

    # dense3 head: all weights are scalars (from SMEM) -> pure VPU.
    pre = (mean0 * sc_ref[2] + mean1 * sc_ref[3]
           + std0 * sc_ref[4] + std1 * sc_ref[5] + sc_ref[8])          # (1, 1)
    o_ref[...] = hidden0 * sc_ref[6] + hidden1 * sc_ref[7] + pre       # (B, 1)


# ---------------------------------------------------------------------------
# One-time parameter preparation (all transposes / folds happen ONCE here).
# ---------------------------------------------------------------------------
def prepare_params(params):
    w0_t = jnp.asarray(params['dense_w'], jnp.float32).T        # (In, 32)
    b0 = jnp.asarray(params['dense_b'], jnp.float32)             # (32,)
    In = w0_t.shape[0]

    # Fold (x - 50)/100 into layer 0:  ((x*0.01 - 0.5) @ W + b)
    #   == x @ (0.01*W) + (b - 0.5*sum(W, axis=0))
    w0_folded = 0.01 * w0_t                                       # (In, 32)
    b0_folded = b0 - 0.5 * jnp.sum(w0_t, axis=0)                  # (32,)

    w1 = jnp.asarray(params['dense1_w'], jnp.float32)             # (2, 32)
    b1 = jnp.asarray(params['dense1_b'], jnp.float32)             # (2,)
    w3 = jnp.asarray(params['dense3_w'], jnp.float32).reshape(-1)  # (6,) [m0,m1,s0,s1,h0,h1]
    b3 = jnp.asarray(params['dense3_b'], jnp.float32).reshape(-1)  # (1,)

    packed = jnp.zeros((In + 3, 32), jnp.float32)
    packed = packed.at[0:In, :].set(w0_folded)
    packed = packed.at[In, :].set(b0_folded)
    packed = packed.at[In + 1, :].set(w1[0])
    packed = packed.at[In + 2, :].set(w1[1])

    scalars = jnp.concatenate([b1, w3, b3]).astype(jnp.float32)   # (9,)
    return {'packed': packed, 'scalars': scalars}


@jax.jit
def ntrack_forward(prepped, inputs, batch_weights):
    # Same assumption as the PyTorch model: batch_weights is (1, B) and already
    # normalized by the caller.  We feed it to the kernel as a (B, 1) column so
    # the weighted stats are a plain sublane reduction (no in-kernel layout shuffle).
    B, In = inputs.shape
    bw_col = jnp.reshape(batch_weights.astype(jnp.float32), (B, 1))

    vmem = pl.BlockSpec(memory_space=pltpu.MemorySpace.VMEM)
    smem = pl.BlockSpec(memory_space=pltpu.MemorySpace.SMEM)

    flops = 2 * B * In * 32 + 2 * B * 32 * 2 + 16 * B
    bytes_accessed = 4 * (B * In + B + (In + 3) * 32 + 9 + B)

    return pl.pallas_call(
        _ntrack_kernel,
        out_shape=jax.ShapeDtypeStruct((B, 1), jnp.float32),
        in_specs=[vmem, vmem, vmem, smem],
        out_specs=vmem,
        compiler_params=pltpu.CompilerParams(
            vmem_limit_bytes=32 * 1024 * 1024),
        cost_estimate=pl.CostEstimate(
            flops=int(flops), transcendentals=0,
            bytes_accessed=int(bytes_accessed)),
    )(inputs.astype(jnp.float32), bw_col, prepped['packed'], prepped['scalars'])


# ---------------------------------------------------------------------------
# Pure-JAX reference mirroring the PyTorch forward exactly (eval mode).
# ---------------------------------------------------------------------------
def reference_forward(params, inputs, batch_weights):
    x = (inputs - 50.0) / 100.0
    h = jax.nn.relu(x @ params['dense_w'].T + params['dense_b'])
    hidden = jax.nn.relu(h @ params['dense1_w'].T + params['dense1_b'])
    B = inputs.shape[0]
    F = hidden.shape[-1]
    mean = jnp.broadcast_to(batch_weights @ hidden, (B, F))
    second = jnp.broadcast_to(batch_weights @ (hidden ** 2), (B, F))
    std = second - mean ** 2
    feats = jnp.concatenate([mean, std, hidden], axis=1)
    return feats @ params['dense3_w'].T + params['dense3_b']


if __name__ == "__main__":
    key = jax.random.PRNGKey(0)
    B, input_size = 8, 6            # batch fills one sublane group

    keys = jax.random.split(key, 10)

    def u(k, shape, scale):
        return jax.random.uniform(k, shape, jnp.float32, -scale, scale)

    params = {
        'dense_w': u(keys[0], (32, input_size), 1.0 / np.sqrt(input_size)),
        'dense_b': u(keys[1], (32,), 1.0 / np.sqrt(input_size)),
        'dense1_w': u(keys[2], (2, 32), 1.0 / np.sqrt(32)),
        'dense1_b': u(keys[3], (2,), 1.0 / np.sqrt(32)),
        'dense3_w': u(keys[4], (1, 6), 1.0 / np.sqrt(6)),
        'dense3_b': u(keys[5], (1,), 1.0 / np.sqrt(6)),
    }

    # Inputs roughly in the regime the (x - 50)/100 normalization expects.
    inputs = jax.random.uniform(keys[6], (B, input_size), jnp.float32, 0.0, 100.0)
    bw = jax.random.uniform(keys[7], (1, B), jnp.float32, 0.1, 1.0)
    batch_weights = bw / jnp.sum(bw)

    prepped = prepare_params(params)
    out = jax.block_until_ready(ntrack_forward(prepped, inputs, batch_weights))
    assert out.shape == (B, 1), out.shape

    ref = jax.block_until_ready(reference_forward(params, inputs, batch_weights))
    assert np.allclose(np.asarray(out), np.asarray(ref), atol=1e-4, rtol=1e-4), (
        np.asarray(out), np.asarray(ref))

    print("KERNEL_OK")
</pallas_src>

<mosaic_0001>
module attributes {stable_mosaic.version = 11 : i64} {
  func.func @_ntrack_kernel(%arg0: memref<8x6xf32, #tpu.memory_space<vmem>>, %arg1: memref<8x1xf32, #tpu.memory_space<vmem>>, %arg2: memref<9x32xf32, #tpu.memory_space<vmem>>, %arg3: memref<9xf32, #tpu.memory_space<smem>>, %arg4: memref<8x1xf32, #tpu.memory_space<vmem>>) attributes {dimension_semantics = [], scalar_prefetch = 0 : i64, scratch_operands = 0 : i64, tpu.core_type = #tpu.core_type<tc>} {
    %c0 = arith.constant 0 : index
    %c0_0 = arith.constant 0 : index
    %0 = vector.load %arg2[%c0, %c0_0] : memref<9x32xf32, #tpu.memory_space<vmem>>, vector<6x32xf32>
    %c6 = arith.constant 6 : index
    %c0_1 = arith.constant 0 : index
    %1 = vector.load %arg2[%c6, %c0_1] : memref<9x32xf32, #tpu.memory_space<vmem>>, vector<1x32xf32>
    %c7 = arith.constant 7 : index
    %c0_2 = arith.constant 0 : index
    %2 = vector.load %arg2[%c7, %c0_2] : memref<9x32xf32, #tpu.memory_space<vmem>>, vector<1x32xf32>
    %c8 = arith.constant 8 : index
    %c0_3 = arith.constant 0 : index
    %3 = vector.load %arg2[%c8, %c0_3] : memref<9x32xf32, #tpu.memory_space<vmem>>, vector<1x32xf32>
    %c0_4 = arith.constant 0 : index
    %c0_5 = arith.constant 0 : index
    %4 = vector.load %arg0[%c0_4, %c0_5] : memref<8x6xf32, #tpu.memory_space<vmem>>, vector<8x6xf32>
    %cst = arith.constant dense<0.000000e+00> : vector<8x32xf32>
    %5 = tpu.matmul %4, %0, %cst {dimension_numbers = #tpu.dot_dimension_numbers<[1], [0], [0], [1], [0, 0, 1, 1], [], []>} : vector<8x6xf32>, vector<6x32xf32>, vector<8x32xf32> -> vector<8x32xf32>
    %6 = vector.broadcast %1 : vector<1x32xf32> to vector<8x32xf32>
    %7 = arith.addf %5, %6 : vector<8x32xf32>
    %cst_6 = arith.constant 0.000000e+00 : f32
    %8 = vector.broadcast %cst_6 : f32 to vector<8x32xf32>
    %9 = arith.maximumf %7, %8 : vector<8x32xf32>
    %10 = vector.broadcast %2 : vector<1x32xf32> to vector<8x32xf32>
    %11 = arith.mulf %9, %10 : vector<8x32xf32>
    %cst_7 = arith.constant dense<0.000000e+00> : vector<8xf32>
    %12 = vector.multi_reduction <add>, %11, %cst_7 [1] : vector<8x32xf32> to vector<8xf32>
    %13 = vector.shape_cast %12 : vector<8xf32> to vector<8x1xf32>
    %c0_8 = arith.constant 0 : index
    %14 = memref.load %arg3[%c0_8] : memref<9xf32, #tpu.memory_space<smem>>
    %15 = vector.broadcast %14 : f32 to vector<8x1xf32>
    %16 = arith.addf %13, %15 : vector<8x1xf32>
    %cst_9 = arith.constant 0.000000e+00 : f32
    %17 = vector.broadcast %cst_9 : f32 to vector<8x1xf32>
    %18 = arith.maximumf %16, %17 : vector<8x1xf32>
    %19 = vector.broadcast %3 : vector<1x32xf32> to vector<8x32xf32>
    %20 = arith.mulf %9, %19 : vector<8x32xf32>
    %cst_10 = arith.constant dense<0.000000e+00> : vector<8xf32>
    %21 = vector.multi_reduction <add>, %20, %cst_10 [1] : vector<8x32xf32> to vector<8xf32>
    %22 = vector.shape_cast %21 : vector<8xf32> to vector<8x1xf32>
    %c1 = arith.constant 1 : index
    %23 = memref.load %arg3[%c1] : memref<9xf32, #tpu.memory_space<smem>>
    %24 = vector.broadcast %23 : f32 to vector<8x1xf32>
    %25 = arith.addf %22, %24 : vector<8x1xf32>
    %cst_11 = arith.constant 0.000000e+00 : f32
    %26 = vector.broadcast %cst_11 : f32 to vector<8x1xf32>
    %27 = arith.maximumf %25, %26 : vector<8x1xf32>
    %c0_12 = arith.constant 0 : index
    %c0_13 = arith.constant 0 : index
    %28 = vector.load %arg1[%c0_12, %c0_13] : memref<8x1xf32, #tpu.memory_space<vmem>>, vector<8x1xf32>
    %29 = arith.mulf %28, %18 : vector<8x1xf32>
    %cst_14 = arith.constant dense<0.000000e+00> : vector<1xf32>
    %30 = vector.multi_reduction <add>, %29, %cst_14 [0] : vector<8x1xf32> to vector<1xf32>
    %31 = vector.shape_cast %30 : vector<1xf32> to vector<1x1xf32>
    %32 = arith.mulf %28, %27 : vector<8x1xf32>
    %cst_15 = arith.constant dense<0.000000e+00> : vector<1xf32>
    %33 = vector.multi_reduction <add>, %32, %cst_15 [0] : vector<8x1xf32> to vector<1xf32>
    %34 = vector.shape_cast %33 : vector<1xf32> to vector<1x1xf32>
    %35 = arith.mulf %28, %18 : vector<8x1xf32>
    %36 = arith.mulf %35, %18 : vector<8x1xf32>
    %cst_16 = arith.constant dense<0.000000e+00> : vector<1xf32>
    %37 = vector.multi_reduction <add>, %36, %cst_16 [0] : vector<8x1xf32> to vector<1xf32>
    %38 = vector.shape_cast %37 : vector<1xf32> to vector<1x1xf32>
    %39 = arith.mulf %28, %27 : vector<8x1xf32>
    %40 = arith.mulf %39, %27 : vector<8x1xf32>
    %cst_17 = arith.constant dense<0.000000e+00> : vector<1xf32>
    %41 = vector.multi_reduction <add>, %40, %cst_17 [0] : vector<8x1xf32> to vector<1xf32>
    %42 = vector.shape_cast %41 : vector<1xf32> to vector<1x1xf32>
    %43 = arith.mulf %31, %31 : vector<1x1xf32>
    %44 = arith.subf %38, %43 : vector<1x1xf32>
    %45 = arith.mulf %34, %34 : vector<1x1xf32>
    %46 = arith.subf %42, %45 : vector<1x1xf32>
    %c2 = arith.constant 2 : index
    %47 = memref.load %arg3[%c2] : memref<9xf32, #tpu.memory_space<smem>>
    %48 = vector.broadcast %47 : f32 to vector<1x1xf32>
    %49 = arith.mulf %31, %48 : vector<1x1xf32>
    %c3 = arith.constant 3 : index
    %50 = memref.load %arg3[%c3] : memref<9xf32, #tpu.memory_space<smem>>
    %51 = vector.broadcast %50 : f32 to vector<1x1xf32>
    %52 = arith.mulf %34, %51 : vector<1x1xf32>
    %53 = arith.addf %49, %52 : vector<1x1xf32>
    %c4 = arith.constant 4 : index
    %54 = memref.load %arg3[%c4] : memref<9xf32, #tpu.memory_space<smem>>
    %55 = vector.broadcast %54 : f32 to vector<1x1xf32>
    %56 = arith.mulf %44, %55 : vector<1x1xf32>
    %57 = arith.addf %53, %56 : vector<1x1xf32>
    %c5 = arith.constant 5 : index
    %58 = memref.load %arg3[%c5] : memref<9xf32, #tpu.memory_space<smem>>
    %59 = vector.broadcast %58 : f32 to vector<1x1xf32>
    %60 = arith.mulf %46, %59 : vector<1x1xf32>
    %61 = arith.addf %57, %60 : vector<1x1xf32>
    %c8_18 = arith.constant 8 : index
    %62 = memref.load %arg3[%c8_18] : memref<9xf32, #tpu.memory_space<smem>>
    %63 = vector.broadcast %62 : f32 to vector<1x1xf32>
    %64 = arith.addf %61, %63 : vector<1x1xf32>
    %c6_19 = arith.constant 6 : index
    %65 = memref.load %arg3[%c6_19] : memref<9xf32, #tpu.memory_space<smem>>
    %66 = vector.broadcast %65 : f32 to vector<8x1xf32>
    %67 = arith.mulf %18, %66 : vector<8x1xf32>
    %c7_20 = arith.constant 7 : index
    %68 = memref.load %arg3[%c7_20] : memref<9xf32, #tpu.memory_space<smem>>
    %69 = vector.broadcast %68 : f32 to vector<8x1xf32>
    %70 = arith.mulf %27, %69 : vector<8x1xf32>
    %71 = arith.addf %67, %70 : vector<8x1xf32>
    %72 = vector.broadcast %64 : vector<1x1xf32> to vector<8x1xf32>
    %73 = arith.addf %71, %72 : vector<8x1xf32>
    %c0_21 = arith.constant 0 : index
    %c0_22 = arith.constant 0 : index
    %74 = vector.load %arg4[%c0_21, %c0_22] : memref<8x1xf32, #tpu.memory_space<vmem>>, vector<8x1xf32>
    tpu.vector_store %arg4[%c0_21, %c0_22], %73 {strides = array<i32>} : memref<8x1xf32, #tpu.memory_space<vmem>>, vector<8x1xf32>,
    return
  }
}

</mosaic_0001>

<llo_original>
// kernel: ntrack_forward.1
$region0: #{ntrack_forward.1}
  #allocation0 [shape = 'u32[]', space=smem, size = 0x4, offset = 0x4, fixed_abs, tag = 'smem constant byte address 0x4 - core index']
  #allocation1 [shape = 'u32[144,128]{1,0:T(1,128)}', space=vmem, size = 0x12000, scoped, tag = 'internal scratch']
  %s0 = inlined_call_operand.vmem [shape: f32[8,6], index: 0, kind: input, shape index: {}]
  %s1 = inlined_call_operand.vmem [shape: f32[8,1], index: 1, kind: input, shape index: {}]
  %s2 = inlined_call_operand.hbm [shape: f32[9,32], index: 2, kind: input, shape index: {}]
  %s3 = inlined_call_operand.vmem [shape: f32[9], index: 3, kind: input, shape index: {}]
  %s4 = inlined_call_operand.vmem [shape: f32[8,1], index: 4, kind: output, shape index: {}]
  %s5 = sld [smem:[#allocation0]]
  $region34: #{ntrack_forward.1} parent=0
    _
  %s7 = ssub.s32 1, %s5
  %s8 = scalar_select 0, %s7, %s5
  $region1: #{ntrack_forward.1} parent=0
    #allocation2 [shape = 'u8[8192]{0}', space=vmem, size = 0x2000, scoped, tag = 'input window, operand 2, single buffered']
    #allocation3 [shape = 's32[1]{0}', space=sflag, size = 0x4, scoped, tag = 'scoped memory for ntrack_forward.1']
    #allocation4 [shape = 's32[1]{0}', space=sflag, size = 0x4, scoped, tag = 'scoped memory for ntrack_forward.1']
    #allocation5 [shape = 'u8[512]{0}', space=smem, size = 0x200, scoped, tag = 'input window, operand 3, single buffered']
    %9 = vsyncpa [#allocation3], 0
    %10 = vsyncpa [#allocation4], 0
    // Predicated region
    $region2: #{ntrack_forward.1} parent=1 // pred_check
      _
    $region3: #{ntrack_forward.1} parent=1 // pred_check_branch
      %12 = sbr.rel (0) target = $region5
    $region4: #{ntrack_forward.1} parent=1 // pred_region
      _
    $region5: #{ntrack_forward.1} parent=1 // pred_fallthru
      _
    // Predicated region
    $region6: #{ntrack_forward.1} parent=1 // pred_check
      _
    $region7: #{ntrack_forward.1} parent=1 // pred_check_branch
      %14 = sbr.rel (0) target = $region9
    $region8: #{ntrack_forward.1} parent=1 // pred_region
      _
    $region9: #{ntrack_forward.1} parent=1 // pred_fallthru
      _
    // Predicated region
    $region10: #{ntrack_forward.1} parent=1 // pred_check
      _
    $region11: #{ntrack_forward.1} parent=1 // pred_check_branch
      %16 = sbr.rel (0) target = $region13
    $region12: #{ntrack_forward.1} parent=1 // pred_region
      %s18 = ssub.s32 256, 256
      %19 = vsyncadd [#allocation3], %s18
      %s20 = sshll.u32 [#allocation2], 4
      %s21 = int_to_ptr.vmem [resolvable:$true] %s20
      %26 = dma.hbm_to_vmem [thread:$0]  %s2, 256, %s21, [#allocation3], 128, 128, 8
    $region13: #{ntrack_forward.1} parent=1 // pred_fallthru
      _
    // Predicated region
    $region14: #{ntrack_forward.1} parent=1 // pred_check
      _
    $region15: #{ntrack_forward.1} parent=1 // pred_check_branch
      %28 = sbr.rel (0) target = $region17
    $region16: #{ntrack_forward.1} parent=1 // pred_region
      %s30 = ssub.s32 16, 16
      %31 = vsyncadd [#allocation4], %s30
      %s33 = sshll.u32 %s3, 4
      %s34 = int_to_ptr.vmem [resolvable:$true] %s33
      %36 = dma.vmem_to_smem %s34, 16, [#allocation5], [#allocation4]
    $region17: #{ntrack_forward.1} parent=1 // pred_fallthru
      _
    // Predicated region
    $region18: #{ntrack_forward.1} parent=1 // pred_check
      _
    $region19: #{ntrack_forward.1} parent=1 // pred_check_branch
      %38 = sbr.rel (0) target = $region21
    $region20: #{ntrack_forward.1} parent=1 // pred_region
      %39 = dma.done [#allocation3], 256
    $region21: #{ntrack_forward.1} parent=1 // pred_fallthru
      _
    // Predicated region
    $region22: #{ntrack_forward.1} parent=1 // pred_check
      _
    $region23: #{ntrack_forward.1} parent=1 // pred_check_branch
      %41 = sbr.rel (0) target = $region25
    $region24: #{ntrack_forward.1} parent=1 // pred_region
      %42 = dma.done [#allocation4], 16
    $region25: #{ntrack_forward.1} parent=1 // pred_fallthru
      _
    %43 = sfence
    %v44 = vld [vmem:[#allocation2] sm:$0x3f]
    %v45 = vld [vmem:[#allocation2 + $0x6] sm:$0x1]
    %v46 = vld [vmem:[#allocation2 + $0x7] sm:$0x1]
    %v47 = vld [vmem:[#allocation2 + $0x8] sm:$0x1]
    %v48 = vld [vmem:[%s0] sm:$0xff]
    %v49 = vlaneseq
    %v50 = vshrl.u32 %v49, 7
    %v51 = vsub.s32 0, %v50
    %v52 = vrot.slane %v45, %v51
    %vm53 = vcmask 48128
    %v55 = vsel %vm53, %v48, 0
    %vm57 = vcmask 1045504
    %v59 = vsel %vm57, %v44, 0
    %61 = vmatprep.subr.mxu0 0.0
    %62 = vmatpush1.msra.mxu0 0.0
    %63 = vmatprep.subr.mxu0 0.0
    %64 = vmatpush1.msra.mxu0 0.0
    %65 = vmatprep.subr.mxu0 0.0
    %66 = vmatpush1.msra.mxu0 0.0
    %67 = vmatprep.subr.mxu0 0.0
    %68 = vmatpush1.msra.mxu0 0.0
    %69 = vmatprep.subr.mxu0 0.0
    %70 = vmatpush1.msra.mxu0 0.0
    %71 = vmatprep.subr.mxu0 0.0
    %72 = vmatpush1.msra.mxu0 0.0
    %73 = vmatprep.subr.mxu0 0.0
    %74 = vmatpush1.msra.mxu0 0.0
    %75 = vmatprep.subr.mxu0 0.0
    %76 = vmatpush1.msra.mxu0 0.0
    %77 = vmatprep.subr.mxu0 0.0
    %78 = vmatpush1.msra.mxu0 0.0
    %79 = vmatprep.subr.mxu0 0.0
    %80 = vmatpush1.msra.mxu0 0.0
    %81 = vmatprep.subr.mxu0 0.0
    %82 = vmatpush1.msra.mxu0 0.0
    %83 = vmatprep.subr.mxu0 0.0
    %84 = vmatpush1.msra.mxu0 0.0
    %85 = vmatprep.subr.mxu0 0.0
    %86 = vmatpush1.msra.mxu0 0.0
    %87 = vmatprep.subr.mxu0 0.0
    %88 = vmatpush1.msra.mxu0 0.0
    %89 = vmatprep.subr.mxu0 0.0
    %90 = vmatpush1.msra.mxu0 0.0
    %91 = vmatprep.subr.mxu0 0.0
    %92 = vmatpush1.msra.mxu0 %v59
    %93 = vmatprep.subr.mxu0 0.0
    %94 = vmatpush2.msra.mxu0 0.0
    %95 = vmatprep.subr.mxu0 0.0
    %96 = vmatpush2.msra.mxu0 0.0
    %97 = vmatprep.subr.mxu0 0.0
    %98 = vmatpush2.msra.mxu0 0.0
    %99 = vmatprep.subr.mxu0 0.0
    %100 = vmatpush2.msra.mxu0 0.0
    %101 = vmatprep.subr.mxu0 0.0
    %102 = vmatpush2.msra.mxu0 0.0
    %103 = vmatprep.subr.mxu0 0.0
    %104 = vmatpush2.msra.mxu0 0.0
    %105 = vmatprep.subr.mxu0 0.0
    %106 = vmatpush2.msra.mxu0 0.0
    %107 = vmatprep.subr.mxu0 0.0
    %108 = vmatpush2.msra.mxu0 0.0
    %109 = vmatprep.subr.mxu0 0.0
    %110 = vmatpush2.msra.mxu0 0.0
    %111 = vmatprep.subr.mxu0 0.0
    %112 = vmatpush2.msra.mxu0 0.0
    %113 = vmatprep.subr.mxu0 0.0
    %114 = vmatpush2.msra.mxu0 0.0
    %115 = vmatprep.subr.mxu0 0.0
    %116 = vmatpush2.msra.mxu0 0.0
    %117 = vmatprep.subr.mxu0 0.0
    %118 = vmatpush2.msra.mxu0 0.0
    %119 = vmatprep.subr.mxu0 0.0
    %120 = vmatpush2.msra.mxu0 0.0
    %121 = vmatprep.subr.mxu0 0.0
    %122 = vmatpush2.msra.mxu0 0.0
    %123 = vmatprep.subr.mxu0 0.0
    %124 = vmatpush2.msra.mxu0 0.0
    %125 = vmatprep.mubr.f32.mxu0 0.0
    %126 = vmatmul.mubr.f32.gmra.mxu0 %v55
    %v127 = vpop.f32.mrf.mxu0
    %v128 = vadd.f32 %v52, %v127
    %v129 = vpop.f32.mrf.mxu0
    %130 = vdwg.mxu0
    %v131 = vmax.f32 %v128, 0.0
    %v132 = vlaneseq
    %v133 = vshrl.u32 %v132, 7
    %v134 = vsub.s32 0, %v133
    %v135 = vrot.slane %v46, %v134
    %v136 = vmul.f32 %v131, %v135
    %vm137 = vcmask 261120
    %v138 = vsel %vm137, %v136, 0.0
    %139 = vadd.xlane.f32.xlu0 %v138
    %v140 = vpop.xlane.xlu0 %139
    %s141 = sld [smem:[#allocation5]]
    %v142 = vstv %s141
    %v143 = vadd.f32 %v140, %v142
    %v144 = vmax.f32 %v143, 0.0
    %v145 = vlaneseq
    %v146 = vshrl.u32 %v145, 7
    %v147 = vsub.s32 0, %v146
    %v148 = vrot.slane %v47, %v147
    %v149 = vmul.f32 %v131, %v148
    %v150 = vsel %vm137, %v149, 0.0
    %151 = vadd.xlane.f32.xlu0 %v150
    %v152 = vpop.xlane.xlu0 %151
    %s153 = sld [smem:[#allocation5 + $0x1]]
    %v154 = vstv %s153
    %v155 = vadd.f32 %v152, %v154
    %v156 = vmax.f32 %v155, 0.0
    %v157 = vld [vmem:[%s1] sm:$0xff]
    %v158 = vmul.f32 %v157, %v144
    %vm159 = vcmask 7168
    %v160 = vsel %vm159, %v158, 0.0
    %v161 = vrot.slane %v160, 4
    %v162 = vadd.f32 %v160, %v161
    %v163 = vrot.slane %v162, 2
    %v164 = vadd.f32 %v162, %v163
    %v165 = vrot.slane %v164, 1
    %v166 = vadd.f32 %v164, %v165
    %v167 = vmul.f32 %v157, %v156
    %v168 = vsel %vm159, %v167, 0.0
    %v169 = vrot.slane %v168, 4
    %v170 = vadd.f32 %v168, %v169
    %v171 = vrot.slane %v170, 2
    %v172 = vadd.f32 %v170, %v171
    %v173 = vrot.slane %v172, 1
    %v174 = vadd.f32 %v172, %v173
    %v175 = vmul.f32 %v158, %v144
    %v176 = vsel %vm159, %v175, 0.0
    %v177 = vrot.slane %v176, 4
    %v178 = vadd.f32 %v176, %v177
    %v179 = vrot.slane %v178, 2
    %v180 = vadd.f32 %v178, %v179
    %v181 = vrot.slane %v180, 1
    %v182 = vadd.f32 %v180, %v181
    %v183 = vmul.f32 %v167, %v156
    %v184 = vsel %vm159, %v183, 0.0
    %v185 = vrot.slane %v184, 4
    %v186 = vadd.f32 %v184, %v185
    %v187 = vrot.slane %v186, 2
    %v188 = vadd.f32 %v186, %v187
    %v189 = vrot.slane %v188, 1
    %v190 = vadd.f32 %v188, %v189
    %v191 = vmul.f32 %v166, %v166
    %v192 = vsub.f32 %v182, %v191
    %v193 = vmul.f32 %v174, %v174
    %v194 = vsub.f32 %v190, %v193
    %s195 = sld [smem:[#allocation5 + $0x2]]
    %v196 = vstv %s195
    %v197 = vmul.f32 %v166, %v196
    %s198 = sld [smem:[#allocation5 + $0x3]]
    %v199 = vstv %s198
    %v200 = vmul.f32 %v174, %v199
    %v201 = vadd.f32 %v197, %v200
    %s202 = sld [smem:[#allocation5 + $0x4]]
    %v203 = vstv %s202
    %v204 = vmul.f32 %v192, %v203
    %v205 = vadd.f32 %v201, %v204
    %s206 = sld [smem:[#allocation5 + $0x5]]
    %v207 = vstv %s206
    %v208 = vmul.f32 %v194, %v207
    %v209 = vadd.f32 %v205, %v208
    %s210 = sld [smem:[#allocation5 + $0x8]]
    %v211 = vstv %s210
    %v212 = vadd.f32 %v209, %v211
    %s213 = sld [smem:[#allocation5 + $0x6]]
    %v214 = vstv %s213
    %v215 = vmul.f32 %v144, %v214
    %s216 = sld [smem:[#allocation5 + $0x7]]
    %v217 = vstv %s216
    %v218 = vmul.f32 %v156, %v217
    %v219 = vadd.f32 %v215, %v218
    %v220 = vadd.f32 %v219, %v212
    %221 = vst.msk [vmem:[%s4] sm:$0xff] %vm159, %v220
    // Predicated region
    $region26: #{ntrack_forward.1} parent=1 // pred_check
      _
    $region27: #{ntrack_forward.1} parent=1 // pred_check_branch
      %223 = sbr.rel (0) target = $region29
    $region28: #{ntrack_forward.1} parent=1 // pred_region
      _
    $region29: #{ntrack_forward.1} parent=1 // pred_fallthru
      _
    // Predicated region
    $region30: #{ntrack_forward.1} parent=1 // pred_check
      _
    $region31: #{ntrack_forward.1} parent=1 // pred_check_branch
      %225 = sbr.rel (0) target = $region33
    $region32: #{ntrack_forward.1} parent=1 // pred_region
      _
    $region33: #{ntrack_forward.1} parent=1 // pred_fallthru
      _
    %226 = vsyncpa [#allocation3], 1
    %227 = vsyncpa [#allocation4], 1

</llo_original>
